<compile_context>
chip_gen: v5e
topology: v5e:2x2
jax: 0.10.0
libtpu: 0.0.40
codegen_flags: <defaults>
</compile_context>

<pallas_src>
import jax
import jax.numpy as jnp
import numpy as np
from jax.experimental import pallas as pl
from jax.experimental.pallas import tpu as pltpu


# ---------------------------------------------------------------------------
# Kernel body: one VPU multiply.  code_ref is either a (br, 1) gate column
# (lane-broadcast) or an equal-shape (br, bl) tile; jnp broadcasting + dtype
# promotion handles both, and the result is cast to the output dtype.
# ---------------------------------------------------------------------------
def _mmc_gate_kernel(code_ref, x_ref, o_ref):
    o_ref[...] = (x_ref[...] * code_ref[...]).astype(o_ref.dtype)


# ---------------------------------------------------------------------------
# Dtype-aware, byte-capped tile selection.
# ---------------------------------------------------------------------------
_TILE_BYTES = 4 * 1024 * 1024          # ~4 MiB per in/out tile (double-buffered)
_LANE_BYTES_CAP = 16 * 1024            # lane width cap in bytes (4096 f32 / 8192 bf16)
_VMEM_LIMIT = 48 * 1024 * 1024         # > v5e's 16 MiB default, < v7x's 64 MiB physical
_MEGACORE_SPLIT_BYTES = 2 * 1024 * 1024  # only force >=2 grid steps on non-tiny problems


def _row_multiple(itemsize):
    # Sublane packing: f32 -> 8, bf16/f16 -> 16, int8/fp8 -> 32.
    return max(8, 32 // max(1, itemsize))


def _pick_blocks(rows, lanes, itemsize):
    row_mult = _row_multiple(itemsize)

    # Lane block: full extent if it fits the byte cap, else a multiple of 128
    # (lane-dense, unmasked vst).
    lane_cap = max(128, (_LANE_BYTES_CAP // itemsize) // 128 * 128)
    bl = lanes if lanes <= lane_cap else lane_cap

    # Row block: fill the ~4 MiB byte budget, rounded to the sublane packing.
    br = max(row_mult, (_TILE_BYTES // max(1, bl * itemsize)) // row_mult * row_mult)
    if rows <= br:
        br = rows

    # v7x megacore: a non-tiny problem must leave >=2 grid steps so both
    # TensorCores get work.  (No effect on the tiny demo shapes below.)
    total_bytes = rows * lanes * itemsize
    if (pl.cdiv(rows, br) * pl.cdiv(lanes, bl) == 1
            and total_bytes > _MEGACORE_SPLIT_BYTES):
        if rows > row_mult:
            half = -(-rows // 2)
            br = min(br, max(row_mult, -(-half // row_mult) * row_mult))
        elif lanes >= 256:
            half_l = -(-lanes // 2)
            bl = max(128, (half_l // 128) * 128)
    return br, bl


# ---------------------------------------------------------------------------
# Forward wrapper.
# ---------------------------------------------------------------------------
def multimodal_controller_forward(x, indicator, codebook):
    """x: (N, C, *spatial); indicator: (N, num_mode); codebook: (num_mode, C).

    Returns [x * stop_gradient(indicator @ codebook), indicator].
    """
    N, C = x.shape[0], x.shape[1]
    HW = int(np.prod(x.shape[2:], dtype=np.int64))

    # Hoisted tiny matmul + detach (matches PyTorch `.detach()`).
    code = jnp.dot(indicator, codebook, preferred_element_type=jnp.float32)
    code = jax.lax.stop_gradient(code)
    code = code.astype(jnp.result_type(indicator.dtype, codebook.dtype))   # (N, C)

    # PyTorch type promotion: x * code promotes (bf16 x, f32 code -> f32 out).
    out_dtype = jnp.result_type(x.dtype, code.dtype)
    itemsize = jnp.dtype(out_dtype).itemsize

    if HW == 1:
        # Lane-dense fallback: x is effectively (N, C); multiply two equal-shape
        # arrays with C on the lane axis -- no (rows, 1) gate, no masked stores.
        rows, lanes = N, C
        x2 = x.reshape(rows, lanes)
        code2 = code.reshape(rows, lanes)
        make_gate_spec = lambda br, bl: pl.BlockSpec((br, bl), lambda i, j: (i, j))
    else:
        # Stream layout: rows = (n, c), lanes = flattened spatial.  Gate is a
        # (rows, 1) column broadcast over the lane axis inside the kernel.
        # TODO(synk): for 1 < HW < 128 stores run at HW/128 lane utilization;
        # folding channels into lanes needs a full-size gate (extra HBM pass) or
        # an in-kernel lane expansion, neither of which is a clear win.
        rows, lanes = N * C, HW
        x2 = x.reshape(rows, lanes)
        code2 = code.reshape(rows, 1)
        make_gate_spec = lambda br, bl: pl.BlockSpec((br, 1), lambda i, j: (i, 0))

    br, bl = _pick_blocks(rows, lanes, itemsize)
    grid = (pl.cdiv(rows, br), pl.cdiv(lanes, bl))

    cost = pl.CostEstimate(
        flops=rows * lanes,
        transcendentals=0,
        bytes_accessed=(rows * lanes * jnp.dtype(x.dtype).itemsize          # read x
                        + rows * lanes * itemsize                           # write out
                        + code2.size * jnp.dtype(code2.dtype).itemsize),    # read gate
    )

    # In-place gating (only legal when the promoted dtype equals x's dtype).
    # NOTE: if the caller keeps x live after this call (as the demo below does
    # for the reference check), XLA inserts a defensive copy and the "no second
    # HBM buffer" saving is lost -- donate x at the jit boundary to keep it.
    aliases = {1: 0} if out_dtype == x.dtype else {}

    gated = pl.pallas_call(
        _mmc_gate_kernel,
        out_shape=jax.ShapeDtypeStruct((rows, lanes), out_dtype),
        grid_spec=pltpu.PrefetchScalarGridSpec(
            num_scalar_prefetch=0,
            grid=grid,
            # Row axis is deliberately the OUTER grid axis and the lane axis the
            # inner one: the gate block index (i, 0) is constant across the inner
            # loop, so the tiny gate tile is not re-DMAed every step.  There is
            # no reduction axis here, so this is not a "reduction-last" concern.
            in_specs=[
                make_gate_spec(br, bl),                        # gate
                pl.BlockSpec((br, bl), lambda i, j: (i, j)),   # activation tile
            ],
            out_specs=pl.BlockSpec((br, bl), lambda i, j: (i, j)),
        ),
        input_output_aliases=aliases,
        compiler_params=pltpu.CompilerParams(
            dimension_semantics=("parallel", "parallel"),
            vmem_limit_bytes=_VMEM_LIMIT,
        ),
        cost_estimate=cost,
    )(code2, x2)

    return [gated.reshape(x.shape[:2] + x.shape[2:]), indicator]


def make_codebook(key, num_mode, input_size, controller_rate=0.5):
    """Deterministic synthetic stand-in for the Bernoulli codebook buffer."""
    if controller_rate == 1:
        return jnp.ones((num_mode, input_size), dtype=jnp.float32)
    # TODO(synk): PyTorch rejection-samples until rows are unique; we draw once
    # deterministically (collisions are harmless for the kernel math).
    bits = jax.random.bernoulli(key, p=controller_rate, shape=(num_mode, input_size))
    return bits.astype(jnp.float32)


if __name__ == "__main__":
    key = jax.random.PRNGKey(0)
    k_cb, k_x, k_x2 = jax.random.split(key, 3)

    # --- 4-D conv-style input: (N, C, H, W) --------------------------------
    N, C, H, W = 2, 8, 16, 16
    num_mode = 4
    controller_rate = 0.5

    codebook = make_codebook(k_cb, num_mode, C, controller_rate)
    x = jax.random.normal(k_x, (N, C, H, W), dtype=jnp.float32)
    modes = jnp.arange(N) % num_mode
    indicator = jax.nn.one_hot(modes, num_mode, dtype=jnp.float32)

    gated, ind_out = multimodal_controller_forward(x, indicator, codebook)
    jax.block_until_ready(gated)

    code_ref = (indicator @ codebook)[:, :, None, None]
    ref = x * code_ref
    np.testing.assert_allclose(np.asarray(gated), np.asarray(ref), rtol=1e-6, atol=1e-6)
    np.testing.assert_allclose(np.asarray(ind_out), np.asarray(indicator))

    # --- 2-D MLP-style input (HW == 1 lane-dense path) ---------------------
    x_mlp = jax.random.normal(k_x2, (N, C), dtype=jnp.float32)
    gated2, _ = multimodal_controller_forward(x_mlp, indicator, codebook)
    jax.block_until_ready(gated2)
    ref2 = x_mlp * (indicator @ codebook)
    np.testing.assert_allclose(np.asarray(gated2), np.asarray(ref2), rtol=1e-6, atol=1e-6)

    print("KERNEL_OK")
</pallas_src>

<mosaic_0001>
module attributes {stable_mosaic.version = 11 : i64} {
  func.func @_mmc_gate_kernel(%arg0: i32, %arg1: i32, %arg2: memref<16x1xf32, #tpu.memory_space<vmem>>, %arg3: memref<16x256xf32, #tpu.memory_space<vmem>>, %arg4: memref<16x256xf32, #tpu.memory_space<vmem>>) attributes {dimension_semantics = [#tpu.dimension_semantics<parallel>, #tpu.dimension_semantics<parallel>], iteration_bounds = array<i64: 1, 1>, scalar_prefetch = 0 : i64, scratch_operands = 0 : i64, tpu.core_type = #tpu.core_type<tc>, window_params = [{transform_indices = @transform_0, window_bounds = array<i64: 16, 1>}, {transform_indices = @transform_1, window_bounds = array<i64: 16, 256>}, {transform_indices = @transform_2, window_bounds = array<i64: 16, 256>}]} {
    %c0 = arith.constant 0 : index
    %c0_0 = arith.constant 0 : index
    %0 = vector.load %arg3[%c0, %c0_0] : memref<16x256xf32, #tpu.memory_space<vmem>>, vector<16x256xf32>
    %c0_1 = arith.constant 0 : index
    %c0_2 = arith.constant 0 : index
    %1 = vector.load %arg2[%c0_1, %c0_2] : memref<16x1xf32, #tpu.memory_space<vmem>>, vector<16x1xf32>
    %2 = vector.broadcast %1 : vector<16x1xf32> to vector<16x256xf32>
    %3 = arith.mulf %0, %2 : vector<16x256xf32>
    %c0_3 = arith.constant 0 : index
    %c0_4 = arith.constant 0 : index
    %4 = vector.load %arg4[%c0_3, %c0_4] : memref<16x256xf32, #tpu.memory_space<vmem>>, vector<16x256xf32>
    tpu.vector_store %arg4[%c0_3, %c0_4], %3 {strides = array<i32>} : memref<16x256xf32, #tpu.memory_space<vmem>>, vector<16x256xf32>,
    return
  }
  func.func @transform_0(%arg0: i32, %arg1: i32) -> (i32, i32) {
    %c0_i32 = arith.constant 0 : i32
    %c0_i32_0 = arith.constant 0 : i32
    return %arg0, %c0_i32 : i32, i32
  }
  func.func @transform_1(%arg0: i32, %arg1: i32) -> (i32, i32) {
    %c0_i32 = arith.constant 0 : i32
    return %arg0, %arg1 : i32, i32
  }
  func.func @transform_2(%arg0: i32, %arg1: i32) -> (i32, i32) {
    %c0_i32 = arith.constant 0 : i32
    return %arg0, %arg1 : i32, i32
  }
}

</mosaic_0001>

<llo_original>
// kernel: tpu_custom_call.1
$region0: #{tpu_custom_call.1}
  #allocation0 [shape = 'u32[]', space=smem, size = 0x4, offset = 0x4, fixed_abs, tag = 'smem constant byte address 0x4 - core index']
  #allocation1 [shape = 'u32[72,128]{1,0:T(1,128)}', space=vmem, size = 0x9000, scoped, tag = 'internal scratch']
  %s0 = inlined_call_operand.vmem [shape: f32[16,1], index: 0, kind: input, shape index: {}]
  %s1 = inlined_call_operand.hbm [shape: f32[16,256], index: 1, kind: input, shape index: {}, may-alias: {1,2}]
  %s2 = inlined_call_operand.hbm [shape: f32[16,256], index: 2, kind: output, shape index: {}, may-alias: {1,2}]
  %s3 = sld [smem:[#allocation0]]
  $region22: #{tpu_custom_call.1} parent=0
    _
  %s5 = ssub.s32 1, %s3
  %s6 = scalar_select 0, %s5, %s3
  $region1: #{tpu_custom_call.1} parent=0
    #allocation2 [shape = 'u8[16384]{0}', space=vmem, size = 0x4000, scoped, tag = 'input window, operand 1, single buffered']
    #allocation3 [shape = 's32[1]{0}', space=sflag, size = 0x4, scoped, tag = 'scoped memory for tpu_custom_call.1']
    #allocation4 [shape = 's32[1]{0}', space=sflag, size = 0x4, scoped, tag = 'scoped memory for tpu_custom_call.1']
    #allocation5 [shape = 'u8[16384]{0}', space=vmem, size = 0x4000, scoped, tag = 'output window, operand 0, single buffered']
    %7 = vsyncpa [#allocation3], 0
    %8 = vsyncpa [#allocation4], 0
    // Predicated region
    $region2: #{tpu_custom_call.1} parent=1 // pred_check
      _
    $region3: #{tpu_custom_call.1} parent=1 // pred_check_branch
      %10 = sbr.rel (0) target = $region5
    $region4: #{tpu_custom_call.1} parent=1 // pred_region
      _
    $region5: #{tpu_custom_call.1} parent=1 // pred_fallthru
      _
    // Predicated region
    $region6: #{tpu_custom_call.1} parent=1 // pred_check
      _
    $region7: #{tpu_custom_call.1} parent=1 // pred_check_branch
      %12 = sbr.rel (0) target = $region9
    $region8: #{tpu_custom_call.1} parent=1 // pred_region
      %14 = vsyncadd [#allocation3], 0
      %s15 = sshll.u32 %s1, 4
      %s16 = int_to_ptr.hbm [resolvable:$true] %s15
      %s17 = sshll.u32 [#allocation2], 4
      %s18 = int_to_ptr.vmem [resolvable:$true] %s17
      %23 = dma.hbm_to_vmem [thread:$0]  %s16, 512, %s18, [#allocation3], 256, 256, 16
    $region9: #{tpu_custom_call.1} parent=1 // pred_fallthru
      _
    // Predicated region
    $region10: #{tpu_custom_call.1} parent=1 // pred_check
      _
    $region11: #{tpu_custom_call.1} parent=1 // pred_check_branch
      %25 = sbr.rel (0) target = $region13
    $region12: #{tpu_custom_call.1} parent=1 // pred_region
      %27 = dma.done [#allocation3], 512
    $region13: #{tpu_custom_call.1} parent=1 // pred_fallthru
      _
    %v28 = vld [vmem:[#allocation2] sm:$0xff]
    %v29 = vld [vmem:[#allocation2 + $0x8] sm:$0xff]
    %v30 = vld [vmem:[#allocation2 + $0x10] sm:$0xff]
    %v31 = vld [vmem:[#allocation2 + $0x18] sm:$0xff]
    %v32 = vld [vmem:[%s0] sm:$0xff]
    %v33 = vld [vmem:[%s0 + $0x8] sm:$0xff]
    %35 = vset.pattern.permute.xlu0 0
    %36 = vperm.xlu0 %35, %v32
    %v37 = vpop.permute.xlu0 %36
    %40 = vset.pattern.permute.xlu0 0
    %41 = vperm.xlu0 %40, %v33
    %v42 = vpop.permute.xlu0 %41
    %v44 = vmul.f32 %v28, %v37
    %v45 = vmul.f32 %v29, %v37
    %v46 = vmul.f32 %v30, %v42
    %v47 = vmul.f32 %v31, %v42
    %48 = vst [vmem:[#allocation5] sm:$0xff] %v44
    %49 = vst [vmem:[#allocation5 + $0x8] sm:$0xff] %v45
    %50 = vst [vmem:[#allocation5 + $0x10] sm:$0xff] %v46
    %51 = vst [vmem:[#allocation5 + $0x18] sm:$0xff] %v47
    // Predicated region
    $region14: #{tpu_custom_call.1} parent=1 // pred_check
      _
    $region15: #{tpu_custom_call.1} parent=1 // pred_check_branch
      %53 = sbr.rel (0) target = $region17
    $region16: #{tpu_custom_call.1} parent=1 // pred_region
      %55 = vsyncadd [#allocation4], 0
      %s56 = sshll.u32 [#allocation5], 4
      %s57 = int_to_ptr.vmem [resolvable:$true] %s56
      %s58 = sshll.u32 %s2, 4
      %s59 = int_to_ptr.hbm [resolvable:$true] %s58
      %64 = dma.vmem_to_hbm [thread:$0]  %s57, 512, %s59, [#allocation4], 256, 256, 16
    $region17: #{tpu_custom_call.1} parent=1 // pred_fallthru
      _
    // Predicated region
    $region18: #{tpu_custom_call.1} parent=1 // pred_check
      _
    $region19: #{tpu_custom_call.1} parent=1 // pred_check_branch
      %66 = sbr.rel (0) target = $region21
    $region20: #{tpu_custom_call.1} parent=1 // pred_region
      %68 = dma.done [#allocation4], 512
    $region21: #{tpu_custom_call.1} parent=1 // pred_fallthru
      _
    %69 = vsyncpa [#allocation3], 1
    %70 = vsyncpa [#allocation4], 1

</llo_original>
